<compile_context>
chip_gen: v5e
topology: v5e:2x2
jax: 0.10.0
libtpu: 0.0.40
codegen_flags: <defaults>
</compile_context>

<pallas_src>
import math
from typing import NamedTuple, Optional

import jax
import jax.numpy as jnp
from jax.experimental import pallas as pl
from jax.experimental.pallas import tpu as pltpu


# ---------------------------------------------------------------------------
# Helpers
# ---------------------------------------------------------------------------

def _round_up(x: int, m: int) -> int:
    return ((x + m - 1) // m) * m


def _cdiv(a: int, b: int) -> int:
    return -(-a // b)


def _vmem_capacity_bytes() -> int:
    """Physical VMEM per TensorCore; conservative 64 MiB fallback (v7x)."""
    try:
        return int(pltpu.get_tpu_info().vmem_capacity_bytes)
    except Exception:
        return 64 << 20


# ---------------------------------------------------------------------------
# Kernels
# ---------------------------------------------------------------------------

def _expert_kernel_acc(x_ref, guw_ref, dw_ref, o_ref, acc_ref):
    """grid = (E, nT, nI); I is the innermost 'arbitrary' reduction axis.

    x_ref  : (tT, H)       activation tile (re-used across e and i)
    guw_ref: (H, 2*tI)     fused [gate | up] weight tile of expert e, I-tile i
    dw_ref : (tI, H)       down_proj weight tile of expert e, I-tile i
    o_ref  : (tT, H)       output tile for (e, t) — resident across i
    acc_ref: (tT, H) f32   VMEM accumulator over the I reduction
    """
    i = pl.program_id(2)

    @pl.when(i == 0)
    def _init():
        acc_ref[...] = jnp.zeros_like(acc_ref)

    x = x_ref[...]
    # Fused gate+up projection: one MXU matmul with a 2*tI-wide N dim.
    gu = jnp.dot(x, guw_ref[...], preferred_element_type=jnp.float32)  # (tT, 2*tI)
    tI = guw_ref.shape[-1] // 2
    gate = gu[:, :tI]
    up = gu[:, tI:]
    # SiLU on VPU/EUP, in f32.
    hidden = (gate * jax.nn.sigmoid(gate)) * up                        # (tT, tI)
    # Partial down-projection, accumulated in f32.
    acc_ref[...] += jnp.dot(hidden.astype(x.dtype), dw_ref[...],
                            preferred_element_type=jnp.float32)

    @pl.when(i == pl.num_programs(2) - 1)
    def _flush():
        o_ref[...] = acc_ref[...].astype(o_ref.dtype)


def _expert_kernel_single(x_ref, guw_ref, dw_ref, o_ref):
    """grid = (E, nT); whole I fits one tile — no accumulator scratch needed."""
    x = x_ref[...]
    gu = jnp.dot(x, guw_ref[...], preferred_element_type=jnp.float32)
    tI = guw_ref.shape[-1] // 2
    gate = gu[:, :tI]
    up = gu[:, tI:]
    hidden = (gate * jax.nn.sigmoid(gate)) * up
    o_ref[...] = jnp.dot(hidden.astype(x.dtype), dw_ref[...],
                         preferred_element_type=jnp.float32).astype(o_ref.dtype)


# ---------------------------------------------------------------------------
# Weight preparation (call ONCE at load time; drop the un-fused originals)
# ---------------------------------------------------------------------------

class PreparedExpertWeights(NamedTuple):
    gu_w: jax.Array     # (E, H, nI * 2 * tI)  — per-I-tile fused [gate | up]
    down_w: jax.Array   # (E, I_pad, H)
    tI: int
    I_pad: int
    hidden_size: int
    num_experts: int


def prepare_expert_weights(gate_w, up_w, down_w, *, tI: Optional[int] = None,
                           compute_dtype=jnp.bfloat16) -> PreparedExpertWeights:
    """gate_w/up_w: [E, H, I] (pre-transposed so activation @ W), down_w: [E, I, H].

    Pads I to a multiple of tI (exact for SwiGLU: silu(0)*0 = 0, zero Wd rows
    contribute 0) and interleaves gate/up per I-tile so the kernel does a single
    (tT,H)x(H,2*tI) MXU matmul per step.  Done once at weight-load time — this
    is O(weights) HBM traffic that must not sit on the per-forward path.
    """
    E, H, I = gate_w.shape
    if compute_dtype is not None:
        gate_w = gate_w.astype(compute_dtype)
        up_w = up_w.astype(compute_dtype)
        down_w = down_w.astype(compute_dtype)

    cap = _vmem_capacity_bytes()
    if tI is None:
        # v5e/v6e (128 MiB VMEM): 512; v7x (64 MiB): 256.
        tI = 512 if cap > (96 << 20) else 256
    tI = int(min(_round_up(I, 128), _round_up(int(tI), 128)))
    I_pad = _round_up(I, tI)

    if I_pad != I:
        gate_w = jnp.pad(gate_w, ((0, 0), (0, 0), (0, I_pad - I)))
        up_w = jnp.pad(up_w, ((0, 0), (0, 0), (0, I_pad - I)))
        down_w = jnp.pad(down_w, ((0, 0), (0, I_pad - I), (0, 0)))

    nI = I_pad // tI
    gu_w = jnp.concatenate(
        [gate_w.reshape(E, H, nI, tI), up_w.reshape(E, H, nI, tI)], axis=-1
    ).reshape(E, H, nI * 2 * tI)

    return PreparedExpertWeights(gu_w=gu_w, down_w=down_w, tI=tI, I_pad=I_pad,
                                 hidden_size=H, num_experts=E)


# ---------------------------------------------------------------------------
# Forward
# ---------------------------------------------------------------------------

def moe_experts_forward(hidden_states, prepared: PreparedExpertWeights,
                        *, tT: Optional[int] = None):
    """hidden_states: [B, S, H].  Returns [E*B, S, H] matching
    torch.cat([expert(x) for expert in experts], dim=0)."""
    B, S, H = hidden_states.shape
    assert H == prepared.hidden_size, (H, prepared.hidden_size)
    E = prepared.num_experts
    tI = prepared.tI
    I_pad = prepared.I_pad
    nI = I_pad // tI
    T = B * S
    out_dtype = hidden_states.dtype
    compute_dtype = prepared.gu_w.dtype

    x2d = hidden_states.reshape(T, H).astype(compute_dtype)

    cbytes = jnp.dtype(compute_dtype).itemsize
    obytes = jnp.dtype(out_dtype).itemsize
    cap = _vmem_capacity_bytes()
    budget = max(cap - (8 << 20), 16 << 20)   # leave headroom below physical VMEM
    need_acc = nI > 1

    # VMEM footprint model (double-buffered blocks + optional f32 accumulator):
    #   per tT row : x tile + output tile (x2) + f32 acc
    #   fixed      : fused gate/up tile + down tile (x2)
    per_row = 2 * H * (cbytes + obytes) + (4 * H if need_acc else 0)
    fixed = 2 * H * tI * 3 * cbytes

    if tT is None:
        # Maximize tT (weight HBM traffic scales with nT = cdiv(T, tT)):
        tT_max = max((budget - fixed) // per_row, 16)
        tT_max = max((tT_max // 16) * 16, 16)
        nT = max(_cdiv(T, tT_max), 1)
        tT = _round_up(_cdiv(T, nT), 16)      # minimize padding inside nT tiles
    else:
        tT = max(_round_up(int(tT), 16), 16)
    tT = min(tT, _round_up(T, 16))
    nT = _cdiv(T, tT)
    T_pad = nT * tT

    if T_pad != T:
        x2d = jnp.pad(x2d, ((0, T_pad - T), (0, 0)))

    footprint = fixed + per_row * tT
    hard_cap = min(cap, 128 << 20) - (1 << 20)
    vmem_limit = int(min(max(footprint + (8 << 20), 32 << 20), hard_cap))

    # Advisory cost estimate for XLA scheduling around the custom call.
    flops = 6 * E * T_pad * H * I_pad
    transcendentals = E * T_pad * I_pad
    bytes_accessed = (E * nT * 3 * H * I_pad * cbytes    # weights (re)streamed nT times
                      + E * T_pad * H * cbytes           # activations
                      + E * T_pad * H * obytes)          # output
    cost = pl.CostEstimate(flops=int(flops),
                           transcendentals=int(transcendentals),
                           bytes_accessed=int(bytes_accessed))

    if nI == 1:
        kernel = _expert_kernel_single
        grid = (E, nT)
        in_specs = [
            pl.BlockSpec((tT, H), lambda e, t: (t, 0)),
            pl.BlockSpec((pl.Squeezed(), H, 2 * tI), lambda e, t: (e, 0, 0)),
            pl.BlockSpec((pl.Squeezed(), tI, H), lambda e, t: (e, 0, 0)),
        ]
        out_specs = pl.BlockSpec((pl.Squeezed(), tT, H), lambda e, t: (e, t, 0))
        scratch_shapes = []
        dims = ("parallel", "parallel")
    else:
        kernel = _expert_kernel_acc
        grid = (E, nT, nI)
        in_specs = [
            pl.BlockSpec((tT, H), lambda e, t, i: (t, 0)),
            pl.BlockSpec((pl.Squeezed(), H, 2 * tI), lambda e, t, i: (e, 0, i)),
            pl.BlockSpec((pl.Squeezed(), tI, H), lambda e, t, i: (e, i, 0)),
        ]
        out_specs = pl.BlockSpec((pl.Squeezed(), tT, H), lambda e, t, i: (e, t, 0))
        scratch_shapes = [pltpu.VMEM((tT, H), jnp.float32)]
        dims = ("parallel", "parallel", "arbitrary")

    out = pl.pallas_call(
        kernel,
        out_shape=jax.ShapeDtypeStruct((E, T_pad, H), out_dtype),
        grid_spec=pltpu.PrefetchScalarGridSpec(
            num_scalar_prefetch=0,
            grid=grid,
            in_specs=in_specs,
            out_specs=out_specs,
            scratch_shapes=scratch_shapes,
        ),
        compiler_params=pltpu.CompilerParams(
            dimension_semantics=dims,
            vmem_limit_bytes=vmem_limit),
        cost_estimate=cost,
    )(x2d, prepared.gu_w, prepared.down_w)

    if T_pad != T:
        out = out[:, :T, :]
    return out.reshape(E * B, S, H)


def moe_experts(hidden_states, gate_w, up_w, down_w, *, compute_dtype=jnp.bfloat16,
                tT=None, tI=None):
    """One-shot convenience wrapper (prep + forward).  In production, call
    prepare_expert_weights() once at load time and reuse the result."""
    prepared = prepare_expert_weights(gate_w, up_w, down_w, tI=tI,
                                      compute_dtype=compute_dtype)
    return moe_experts_forward(hidden_states, prepared, tT=tT)


# ---------------------------------------------------------------------------
# Pure-JAX reference mirroring the PyTorch module
# ---------------------------------------------------------------------------

def reference_forward(hidden_states, gate_w, up_w, down_w):
    outs = []
    for e in range(gate_w.shape[0]):
        g = hidden_states @ gate_w[e]
        u = hidden_states @ up_w[e]
        h = (g * jax.nn.sigmoid(g)) * u
        outs.append(h @ down_w[e])
    return jnp.concatenate(outs, axis=0)


# ---------------------------------------------------------------------------
# Self-test
# ---------------------------------------------------------------------------

if __name__ == "__main__":
    key = jax.random.PRNGKey(0)

    # ---- Test 1: module-consistent small config (n_routed_experts=4,
    #      hidden_size=32, moe_intermediate_size=64), f32, nI==1 fast path.
    E, B, S, H, I = 4, 2, 8, 32, 64
    kx, kg, ku, kd = jax.random.split(key, 4)
    hidden_states = jax.random.normal(kx, (B, S, H), dtype=jnp.float32)
    gate_w = jax.random.normal(kg, (E, H, I), dtype=jnp.float32) * 0.05
    up_w = jax.random.normal(ku, (E, H, I), dtype=jnp.float32) * 0.05
    down_w = jax.random.normal(kd, (E, I, H), dtype=jnp.float32) * 0.05

    prepared_f32 = prepare_expert_weights(gate_w, up_w, down_w,
                                          compute_dtype=jnp.float32)
    out = jax.block_until_ready(moe_experts_forward(hidden_states, prepared_f32))
    ref = reference_forward(hidden_states, gate_w, up_w, down_w)
    assert out.shape == (E * B, S, H), out.shape
    assert jnp.allclose(out, ref, atol=1e-4, rtol=1e-3), "test1 mismatch"

    # ---- Test 2: exercise the accumulating (nI>1) path and nT>1 tiling, f32.
    E2, B2, S2, H2, I2 = 2, 2, 16, 32, 256
    k2x, k2g, k2u, k2d = jax.random.split(jax.random.PRNGKey(1), 4)
    hs2 = jax.random.normal(k2x, (B2, S2, H2), dtype=jnp.float32)
    gw2 = jax.random.normal(k2g, (E2, H2, I2), dtype=jnp.float32) * 0.05
    uw2 = jax.random.normal(k2u, (E2, H2, I2), dtype=jnp.float32) * 0.05
    dw2 = jax.random.normal(k2d, (E2, I2, H2), dtype=jnp.float32) * 0.05
    prep2 = prepare_expert_weights(gw2, uw2, dw2, tI=128,
                                   compute_dtype=jnp.float32)
    out2 = jax.block_until_ready(moe_experts_forward(hs2, prep2, tT=16))
    ref2 = reference_forward(hs2, gw2, uw2, dw2)
    assert out2.shape == (E2 * B2, S2, H2), out2.shape
    assert jnp.allclose(out2, ref2, atol=1e-4, rtol=1e-3), "test2 mismatch"

    # ---- Test 3: default bf16 compute path (intended production operating
    #      point), checked against the f32 reference with loose tolerance.
    out3 = jax.block_until_ready(moe_experts(hidden_states, gate_w, up_w, down_w))
    assert out3.shape == (E * B, S, H), out3.shape
    assert jnp.allclose(out3, ref, atol=2e-2, rtol=2e-2), "test3 (bf16) mismatch"

    print("KERNEL_OK")
</pallas_src>

<mosaic_0001>
module attributes {stable_mosaic.version = 11 : i64} {
  func.func @_expert_kernel_single(%arg0: i32, %arg1: i32, %arg2: memref<16x32xf32, #tpu.memory_space<vmem>>, %arg3: memref<1x32x256xf32, #tpu.memory_space<vmem>>, %arg4: memref<1x128x32xf32, #tpu.memory_space<vmem>>, %arg5: memref<1x16x32xf32, #tpu.memory_space<vmem>>) attributes {dimension_semantics = [#tpu.dimension_semantics<parallel>, #tpu.dimension_semantics<parallel>], iteration_bounds = array<i64: 4, 1>, scalar_prefetch = 0 : i64, scratch_operands = 0 : i64, tpu.core_type = #tpu.core_type<tc>, window_params = [{transform_indices = @transform_0, window_bounds = array<i64: 16, 32>}, {transform_indices = @transform_1, window_bounds = array<i64: 1, 32, 256>}, {transform_indices = @transform_2, window_bounds = array<i64: 1, 128, 32>}, {transform_indices = @transform_3, window_bounds = array<i64: 1, 16, 32>}]} {
    %c0 = arith.constant 0 : index
    %c0_0 = arith.constant 0 : index
    %0 = vector.load %arg2[%c0, %c0_0] : memref<16x32xf32, #tpu.memory_space<vmem>>, vector<16x32xf32>
    %c0_1 = arith.constant 0 : index
    %c0_2 = arith.constant 0 : index
    %c0_3 = arith.constant 0 : index
    %1 = vector.load %arg3[%c0_1, %c0_2, %c0_3] : memref<1x32x256xf32, #tpu.memory_space<vmem>>, vector<1x32x256xf32>
    %2 = vector.shape_cast %1 : vector<1x32x256xf32> to vector<32x256xf32>
    %cst = arith.constant dense<0.000000e+00> : vector<16x256xf32>
    %3 = tpu.matmul %0, %2, %cst {dimension_numbers = #tpu.dot_dimension_numbers<[1], [0], [0], [1], [0, 0, 1, 1], [], []>} : vector<16x32xf32>, vector<32x256xf32>, vector<16x256xf32> -> vector<16x256xf32>
    %4 = vector.extract_strided_slice %3 {offsets = [0, 0], sizes = [16, 128], strides = [1, 1]} : vector<16x256xf32> to vector<16x128xf32>
    %5 = vector.extract_strided_slice %3 {offsets = [0, 128], sizes = [16, 128], strides = [1, 1]} : vector<16x256xf32> to vector<16x128xf32>
    %6 = arith.negf %4 : vector<16x128xf32>
    %7 = math.exp %6 : vector<16x128xf32>
    %cst_4 = arith.constant 1.000000e+00 : f32
    %8 = vector.broadcast %cst_4 : f32 to vector<16x128xf32>
    %9 = arith.addf %8, %7 : vector<16x128xf32>
    %10 = arith.divf %8, %9 : vector<16x128xf32>
    %11 = arith.mulf %4, %10 : vector<16x128xf32>
    %12 = arith.mulf %11, %5 : vector<16x128xf32>
    %c0_5 = arith.constant 0 : index
    %c0_6 = arith.constant 0 : index
    %c0_7 = arith.constant 0 : index
    %13 = vector.load %arg4[%c0_5, %c0_6, %c0_7] : memref<1x128x32xf32, #tpu.memory_space<vmem>>, vector<1x128x32xf32>
    %14 = vector.shape_cast %13 : vector<1x128x32xf32> to vector<128x32xf32>
    %cst_8 = arith.constant dense<0.000000e+00> : vector<16x32xf32>
    %15 = tpu.matmul %12, %14, %cst_8 {dimension_numbers = #tpu.dot_dimension_numbers<[1], [0], [0], [1], [0, 0, 1, 1], [], []>} : vector<16x128xf32>, vector<128x32xf32>, vector<16x32xf32> -> vector<16x32xf32>
    %c0_9 = arith.constant 0 : index
    %c0_10 = arith.constant 0 : index
    %c0_11 = arith.constant 0 : index
    %16 = vector.load %arg5[%c0_9, %c0_10, %c0_11] : memref<1x16x32xf32, #tpu.memory_space<vmem>>, vector<1x16x32xf32>
    %17 = vector.shape_cast %16 : vector<1x16x32xf32> to vector<16x32xf32>
    %18 = vector.shape_cast %15 : vector<16x32xf32> to vector<1x16x32xf32>
    tpu.vector_store %arg5[%c0_9, %c0_10, %c0_11], %18 {strides = array<i32>} : memref<1x16x32xf32, #tpu.memory_space<vmem>>, vector<1x16x32xf32>,
    return
  }
  func.func @transform_0(%arg0: i32, %arg1: i32) -> (i32, i32) {
    %c0_i32 = arith.constant 0 : i32
    %c0_i32_0 = arith.constant 0 : i32
    return %arg1, %c0_i32 : i32, i32
  }
  func.func @transform_1(%arg0: i32, %arg1: i32) -> (i32, i32, i32) {
    %c0_i32 = arith.constant 0 : i32
    %c0_i32_0 = arith.constant 0 : i32
    %c0_i32_1 = arith.constant 0 : i32
    return %arg0, %c0_i32, %c0_i32_0 : i32, i32, i32
  }
  func.func @transform_2(%arg0: i32, %arg1: i32) -> (i32, i32, i32) {
    %c0_i32 = arith.constant 0 : i32
    %c0_i32_0 = arith.constant 0 : i32
    %c0_i32_1 = arith.constant 0 : i32
    return %arg0, %c0_i32, %c0_i32_0 : i32, i32, i32
  }
  func.func @transform_3(%arg0: i32, %arg1: i32) -> (i32, i32, i32) {
    %c0_i32 = arith.constant 0 : i32
    %c0_i32_0 = arith.constant 0 : i32
    return %arg0, %arg1, %c0_i32 : i32, i32, i32
  }
}

</mosaic_0001>

<llo_original>
// kernel: tpu_custom_call.1
$region0: #{tpu_custom_call.1}
  #allocation0 [shape = 'u32[]', space=smem, size = 0x4, offset = 0x4, fixed_abs, tag = 'smem constant byte address 0x4 - core index']
  #allocation1 [shape = 'u32[72,128]{1,0:T(1,128)}', space=vmem, size = 0x9000, scoped, tag = 'internal scratch']
  %s0 = inlined_call_operand.vmem [shape: f32[16,32], index: 0, kind: input, shape index: {}]
  %s1 = inlined_call_operand.vmem [shape: f32[4,32,256], index: 1, kind: input, shape index: {}]
  %s2 = inlined_call_operand.vmem [shape: f32[4,128,32], index: 2, kind: input, shape index: {}]
  %s3 = inlined_call_operand.hbm [shape: f32[4,16,32], index: 3, kind: output, shape index: {}]
  %s4 = sld [smem:[#allocation0]]
  $region45: #{tpu_custom_call.1} parent=0
    _
  %s6 = ssub.s32 1, %s4
  %s7 = scalar_select 0, %s6, %s4
  $region1: #{tpu_custom_call.1} parent=0
    #allocation2 [shape = 'u8[16384]{0}', space=vmem, size = 0x4000, scoped, tag = 'output window, operand 0']
    #allocation3 [shape = 's32[2]{0}', space=sflag, size = 0x8, scoped, tag = 'scoped memory for tpu_custom_call.1']
    %8 = vsyncpa [#allocation3], 0
    %s9 = scalar_lea.sflag [#allocation3], 1
    %10 = vsyncpa %s9, 0
    loop: start=0, step=1, limit=6
    $region2: #{tpu_custom_call.1} parent=1 // loop_pre_header
      _
    $region3: #{tpu_custom_call.1} parent=1 // loop_header
      %s12 = sphi 0, %s16
      %p13 = scmp.ge.s32.totalorder %s12, 6
      %s19 = sphi 0, %s31
      %s20 = sphi 0, %s27
      %s21 = sphi 0, %s19
      %s22 = sphi 0, %s20
      %s23 = sphi 0, %s21
      %s24 = sphi 0, %s22
      %s34 = sphi 0, %s36
      %s37 = sphi 0, %s34
      %s38 = sphi 0, %s37
      %s54 = sphi 0, %s38
      %s60 = sphi 0, %s62
      %s63 = sphi 0, %s60
      %s64 = sphi 0, %s63
      %s80 = sphi 0, %s64
      %s86 = sphi 0, %s88
      %s89 = sphi 0, %s86
      %s90 = sphi 0, %s89
      %s106 = sphi 0, %s90
      %s114 = sphi 0, %s116
      %s117 = sphi 0, %s114
      %s118 = sphi 0, %s117
      %s134 = sphi 0, %s118
    $region4: #{tpu_custom_call.1} parent=1 // loop_header_branch
      %15 = sbr.rel (%p13) target = $region8
    $region5: #{tpu_custom_call.1} parent=1 // loop_body
      %s17 = ssub.s32 %s12, 1
      %s18 = ssub.s32 %s12, 2
      %s25 = sadd.s32 1, %s20
      %p26 = scmp.ge.s32.totalorder %s25, 1
      %s27 = scalar_select %p26, 0, %s25
      %s28 = sadd.s32 1, %s19
      %s29 = scalar_select %p26, %s28, %s19
      %p30 = scmp.ge.s32.totalorder %s29, 4
      %s31 = scalar_select %p30, 0, %s29
      %s32 = ssub.s32 %s20, %s27
      %p33 = scmp.eq.s32.totalorder %s32, 0
      %s35 = sadd.s32 %s34, 1
      %s36 = scalar_select %p33, %s34, %s35
      %p39 = pneg %p33
      %p40 = scmp.eq.s32.totalorder %s12, 3
      %p41 = por %p39, %p40
      %p42 = scmp.ne.s32.totalorder %s34, %s37
      %p43 = scmp.eq.s32.totalorder %s12, 0
      %p44 = por %p42, %p43
      %p45 = scmp.ne.s32.totalorder %s34, %s37
      %p46 = scmp.eq.s32.totalorder %s17, 3
      %p47 = por %p45, %p46
      %p48 = scmp.ne.s32.totalorder %s37, %s38
      %p49 = scmp.eq.s32.totalorder %s17, 0
      %p50 = por %p48, %p49
      %p51 = scmp.ne.s32.totalorder %s37, %s38
      %p52 = scmp.eq.s32.totalorder %s18, 3
      %p53 = por %p51, %p52
      %p55 = scmp.ne.s32.totalorder %s38, %s54
      %p56 = scmp.eq.s32.totalorder %s18, 0
      %p57 = por %p55, %p56
      %s58 = ssub.s32 %s19, %s31
      %p59 = scmp.eq.s32.totalorder %s58, 0
      %s61 = sadd.s32 %s60, 1
      %s62 = scalar_select %p59, %s60, %s61
      %p65 = pneg %p59
      %p66 = scmp.eq.s32.totalorder %s12, 3
      %p67 = por %p65, %p66
      %p68 = scmp.ne.s32.totalorder %s60, %s63
      %p69 = scmp.eq.s32.totalorder %s12, 0
      %p70 = por %p68, %p69
      %p71 = scmp.ne.s32.totalorder %s60, %s63
      %p72 = scmp.eq.s32.totalorder %s17, 3
      %p73 = por %p71, %p72
      %p74 = scmp.ne.s32.totalorder %s63, %s64
      %p75 = scmp.eq.s32.totalorder %s17, 0
      %p76 = por %p74, %p75
      %p77 = scmp.ne.s32.totalorder %s63, %s64
      %p78 = scmp.eq.s32.totalorder %s18, 3
      %p79 = por %p77, %p78
      %p81 = scmp.ne.s32.totalorder %s64, %s80
      %p82 = scmp.eq.s32.totalorder %s18, 0
      %p83 = por %p81, %p82
      %s84 = ssub.s32 %s19, %s31
      %p85 = scmp.eq.s32.totalorder %s84, 0
      %s87 = sadd.s32 %s86, 1
      %s88 = scalar_select %p85, %s86, %s87
      %p91 = pneg %p85
      %p92 = scmp.eq.s32.totalorder %s12, 3
      %p93 = por %p91, %p92
      %p94 = scmp.ne.s32.totalorder %s86, %s89
      %p95 = scmp.eq.s32.totalorder %s12, 0
      %p96 = por %p94, %p95
      %p97 = scmp.ne.s32.totalorder %s86, %s89
      %p98 = scmp.eq.s32.totalorder %s17, 3
      %p99 = por %p97, %p98
      %p100 = scmp.ne.s32.totalorder %s89, %s90
      %p101 = scmp.eq.s32.totalorder %s17, 0
      %p102 = por %p100, %p101
      %p103 = scmp.ne.s32.totalorder %s89, %s90
      %p104 = scmp.eq.s32.totalorder %s18, 3
      %p105 = por %p103, %p104
      %p107 = scmp.ne.s32.totalorder %s90, %s106
      %p108 = scmp.eq.s32.totalorder %s18, 0
      %p109 = por %p107, %p108
      %s110 = ssub.s32 %s19, %s31
      %s111 = ssub.s32 %s20, %s27
      %s112 = sor.u32 %s110, %s111
      %p113 = scmp.eq.s32.totalorder %s112, 0
      %s115 = sadd.s32 %s114, 1
      %s116 = scalar_select %p113, %s114, %s115
      %p119 = pneg %p113
      %p120 = scmp.eq.s32.totalorder %s12, 3
      %p121 = por %p119, %p120
      %p122 = scmp.ne.s32.totalorder %s114, %s117
      %p123 = scmp.eq.s32.totalorder %s12, 0
      %p124 = por %p122, %p123
      %p125 = scmp.ne.s32.totalorder %s114, %s117
      %p126 = scmp.eq.s32.totalorder %s17, 3
      %p127 = por %p125, %p126
      %p128 = scmp.ne.s32.totalorder %s117, %s118
      %p129 = scmp.eq.s32.totalorder %s17, 0
      %p130 = por %p128, %p129
      %p131 = scmp.ne.s32.totalorder %s117, %s118
      %p132 = scmp.eq.s32.totalorder %s18, 3
      %p133 = por %p131, %p132
      %p135 = scmp.ne.s32.totalorder %s118, %s134
      %p136 = scmp.eq.s32.totalorder %s18, 0
      %p137 = por %p135, %p136
      %p138 = scmp.le.s32.totalorder 1, %s12
      %p139 = scmp.lt.s32.totalorder %s12, 5
      %p140 = pnand %p138, %p139
      %p141 = pneg %p140
      // Predicated region
      $region9: #{tpu_custom_call.1} parent=5 // pred_check
        _
      $region10: #{tpu_custom_call.1} parent=5 // pred_check_branch
        %143 = sbr.rel (%p140) target = $region12
      $region11: #{tpu_custom_call.1} parent=5 // pred_region
        %s144 = ssub.s32 %s12, 1
        // Predicated region
        $region13: #{tpu_custom_call.1} parent=11 // pred_check
          %p145 = pneg %p50
        $region14: #{tpu_custom_call.1} parent=11 // pred_check_branch
          %147 = sbr.rel (%p145) target = $region16
        $region15: #{tpu_custom_call.1} parent=11 // pred_region
          %s148 = smul.u32 2, %s22
          %p149 = scmp.lt.s32.totalorder %s148, 1
          %s150 = scalar_select %p149, %s148, 1
          %s151 = smul.addr %s150, 8
          %s152 = scalar_lea.vmem %s0, %s151
          %s153 = smul.u32 2, %s22
        $region16: #{tpu_custom_call.1} parent=11 // pred_fallthru
          _
      $region12: #{tpu_custom_call.1} parent=5 // pred_fallthru
        _
      %p154 = scmp.lt.s32.totalorder %s12, 4
      // Predicated region
      $region17: #{tpu_custom_call.1} parent=5 // pred_check
        %p155 = pneg %p154
      $region18: #{tpu_custom_call.1} parent=5 // pred_check_branch
        %157 = sbr.rel (%p155) target = $region20
      $region19: #{tpu_custom_call.1} parent=5 // pred_region
        // Predicated region
        $region21: #{tpu_custom_call.1} parent=19 // pred_check
          %p158 = pneg %p70
        $region22: #{tpu_custom_call.1} parent=19 // pred_check_branch
          %160 = sbr.rel (%p158) target = $region24
        $region23: #{tpu_custom_call.1} parent=19 // pred_region
          %p161 = scmp.lt.s32.totalorder %s19, 3
          %s162 = scalar_select %p161, %s19, 3
          %s163 = smul.addr %s162, 8
          %s164 = smul.addr %s163, 8
          %s165 = scalar_lea.vmem %s1, %s164
        $region24: #{tpu_custom_call.1} parent=19 // pred_fallthru
          _
        // Predicated region
        $region25: #{tpu_custom_call.1} parent=19 // pred_check
          %p166 = pneg %p96
        $region26: #{tpu_custom_call.1} parent=19 // pred_check_branch
          %168 = sbr.rel (%p166) target = $region28
        $region27: #{tpu_custom_call.1} parent=19 // pred_region
          %p169 = scmp.lt.s32.totalorder %s19, 3
          %s170 = scalar_select %p169, %s19, 3
          %s171 = smul.addr %s170, 16
          %s172 = smul.addr %s171, 8
          %s173 = scalar_lea.vmem %s2, %s172
        $region28: #{tpu_custom_call.1} parent=19 // pred_fallthru
          _
      $region20: #{tpu_custom_call.1} parent=5 // pred_fallthru
        _
      %p174 = scmp.le.s32.totalorder 1, %s12
      %p175 = scmp.lt.s32.totalorder %s12, 5
      %p176 = pnand %p174, %p175
      %p177 = pneg %p176
      // Predicated region
      $region29: #{tpu_custom_call.1} parent=5 // pred_check
        _
      $region30: #{tpu_custom_call.1} parent=5 // pred_check_branch
        %179 = sbr.rel (%p176) target = $region32
      $region31: #{tpu_custom_call.1} parent=5 // pred_region
        %s180 = ssub.s32 %s12, 1
        %s181 = smul.u32 2, %s22
        %p182 = scmp.lt.s32.totalorder %s181, 1
        %s183 = scalar_select %p182, %s181, 1
        %s184 = smul.addr %s183, 8
        %s185 = scalar_lea.vmem %s0, %s184
        %p186 = pneg %p50
        %p187 = pneg %p47
        %p188 = scmp.lt.s32.totalorder %s21, 3
        %s189 = scalar_select %p188, %s21, 3
        %s190 = smul.addr %s189, 8
        %s191 = smul.addr %s190, 8
        %s192 = scalar_lea.vmem %s1, %s191
        %p193 = pneg %p76
        %p194 = pneg %p73
        %p195 = scmp.lt.s32.totalorder %s21, 3
        %s196 = scalar_select %p195, %s21, 3
        %s197 = smul.addr %s196, 16
        %s198 = smul.addr %s197, 8
        %s199 = scalar_lea.vmem %s2, %s198
        %p200 = pneg %p102
        %p201 = pneg %p99
        %p202 = pneg %p130
        %p203 = pneg %p127
        %s204 = sand.u32 %s117, 1
        %s205 = scalar_lea.sflag [#allocation3], %s204
        %s206 = sand.u32 %s117, 1
        %s207 = smul.addr %s206, 16
        %s208 = scalar_lea.vmem [#allocation2], %s207
        %s209 = smul.u32 2, %s22
        %p210 = scmp.lt.s32.totalorder %s209, 1
        %s211 = scalar_select %p210, %s209, 1
        %s212 = smul.addr %s211, 8
        %s213 = scalar_lea.vmem %s0, %s212
        %s214 = smul.u32 2, %s22
        %p215 = scmp.lt.s32.totalorder %s21, 3
        %s216 = scalar_select %p215, %s21, 3
        %s217 = smul.addr %s216, 8
        %s218 = smul.addr %s217, 8
        %s219 = scalar_lea.vmem %s1, %s218
        %p220 = scmp.lt.s32.totalorder %s21, 3
        %s221 = scalar_select %p220, %s21, 3
        %s222 = smul.addr %s221, 16
        %s223 = smul.addr %s222, 8
        %s224 = scalar_lea.vmem %s2, %s223
        %s225 = smul.u32 2, %s22
        %v226 = vld [vmem:[%s213] sm:$0xff]
        %v227 = vld [vmem:[%s213 + $0x8] sm:$0xff]
        %v228 = vld [vmem:[%s219] sm:$0xff]
        %v229 = vld [vmem:[%s219 + $0x8] sm:$0xff]
        %v230 = vld [vmem:[%s219 + $0x10] sm:$0xff]
        %v231 = vld [vmem:[%s219 + $0x18] sm:$0xff]
        %v232 = vld [vmem:[%s219 + $0x20] sm:$0xff]
        %v233 = vld [vmem:[%s219 + $0x28] sm:$0xff]
        %v234 = vld [vmem:[%s219 + $0x30] sm:$0xff]
        %v235 = vld [vmem:[%s219 + $0x38] sm:$0xff]
        %vm236 = vcmask 261120
        %v238 = vsel %vm236, %v226, 0
        %v241 = vsel %vm236, %v227, 0
        %243 = vmatpush.msra.mxu0 0.0
        %244 = vmatpush.msra.mxu0 0.0
        %245 = vmatpush.msra.mxu0 0.0
        %246 = vmatpush.msra.mxu0 0.0
        %247 = vmatpush.msra.mxu0 0.0
        %248 = vmatpush.msra.mxu0 0.0
        %249 = vmatpush.msra.mxu0 0.0
        %250 = vmatpush.msra.mxu0 0.0
        %251 = vmatpush.msra.mxu0 0.0
        %252 = vmatpush.msra.mxu0 0.0
        %253 = vmatpush.msra.mxu0 0.0
        %254 = vmatpush.msra.mxu0 0.0
        %255 = vmatpush.msra.mxu0 %v234
        %256 = vmatpush.msra.mxu0 %v232
        %257 = vmatpush.msra.mxu0 %v230
        %258 = vmatpush.msra.mxu0 %v228
        %259 = vmatmul.f32.gmra.mxu0 %v238
        %v260 = vpop.f32.mrf.mxu0
        %v261 = vadd.f32 0.0, %v260
        %262 = vmatmul.f32.gmra.mxu0 %v241
        %v263 = vpop.f32.mrf.mxu0
        %v264 = vadd.f32 0.0, %v263
        %265 = vdwg.mxu0
        %266 = vmatpush.msra.mxu0 0.0
        %267 = vmatpush.msra.mxu0 0.0
        %268 = vmatpush.msra.mxu0 0.0
        %269 = vmatpush.msra.mxu0 0.0
        %270 = vmatpush.msra.mxu0 0.0
        %271 = vmatpush.msra.mxu0 0.0
        %272 = vmatpush.msra.mxu0 0.0
        %273 = vmatpush.msra.mxu0 0.0
        %274 = vmatpush.msra.mxu0 0.0
        %275 = vmatpush.msra.mxu0 0.0
        %276 = vmatpush.msra.mxu0 0.0
        %277 = vmatpush.msra.mxu0 0.0
        %278 = vmatpush.msra.mxu0 %v235
        %279 = vmatpush.msra.mxu0 %v233
        %280 = vmatpush.msra.mxu0 %v231
        %281 = vmatpush.msra.mxu0 %v229
        %282 = vmatmul.f32.gmra.mxu0 %v238
        %v283 = vpop.f32.mrf.mxu0
        %v284 = vadd.f32 0.0, %v283
        %285 = vmatmul.f32.gmra.mxu0 %v241
        %v286 = vpop.f32.mrf.mxu0
        %v287 = vadd.f32 0.0, %v286
        %288 = vdwg.mxu0
        %v289 = vxor.u32 %v261, 2147483648
        %v290 = vxor.u32 %v264, 2147483648
        %v291 = vmul.f32 %v289, 1.442695
        %v292 = vpow.pop %v291
        %v293 = vmul.f32 %v290, 1.442695
        %v294 = vpow.pop %v293
        %v295 = vadd.f32 %v292, 1.0
        %v296 = vadd.f32 %v294, 1.0
        %v297 = vrcp.pop %v295
        %v298 = vmul.f32 %v295, %v297
        %v299 = vsub.f32 1.0, %v298
        %v300 = vmul.f32 %v297, %v299
        %v301 = vadd.f32 %v297, %v300
        %vm302 = vweird.f32 %v295
        %vm303 = vweird.f32 %v297
        %vm304 = vmor %vm302, %vm303
        %v305 = vsel %vm304, %v297, %v301
        %v306 = vand.u32 2147483647, %v295
        %vm307 = vcmp.eq.f32.partialorder %v306, 8.507059e+37
        %v308 = vand.u32 %v295, 2147483648
        %v309 = vor.u32 1.1754944e-38, %v308
        %v310 = vsel %vm307, %v309, %v305
        %v311 = vmul.f32 1.0, %v310
        %v312 = vrcp.pop %v296
        %v313 = vmul.f32 %v296, %v312
        %v314 = vsub.f32 1.0, %v313
        %v315 = vmul.f32 %v312, %v314
        %v316 = vadd.f32 %v312, %v315
        %vm317 = vweird.f32 %v296
        %vm318 = vweird.f32 %v312
        %vm319 = vmor %vm317, %vm318
        %v320 = vsel %vm319, %v312, %v316
        %v321 = vand.u32 2147483647, %v296
        %vm322 = vcmp.eq.f32.partialorder %v321, 8.507059e+37
        %v323 = vand.u32 %v296, 2147483648
        %v324 = vor.u32 1.1754944e-38, %v323
        %v325 = vsel %vm322, %v324, %v320
        %v326 = vmul.f32 1.0, %v325
        %v327 = vmul.f32 %v261, %v311
        %v328 = vmul.f32 %v264, %v326
        %v329 = vmul.f32 %v327, %v284
        %v330 = vmul.f32 %v328, %v287
        %v331 = vld [vmem:[%s224] sm:$0xff]
        %v332 = vld [vmem:[%s224 + $0x8] sm:$0xff]
        %v333 = vld [vmem:[%s224 + $0x10] sm:$0xff]
        %v334 = vld [vmem:[%s224 + $0x18] sm:$0xff]
        %v335 = vld [vmem:[%s224 + $0x20] sm:$0xff]
        %v336 = vld [vmem:[%s224 + $0x28] sm:$0xff]
        %v337 = vld [vmem:[%s224 + $0x30] sm:$0xff]
        %v338 = vld [vmem:[%s224 + $0x38] sm:$0xff]
        %v339 = vld [vmem:[%s224 + $0x40] sm:$0xff]
        %v340 = vld [vmem:[%s224 + $0x48] sm:$0xff]
        %v341 = vld [vmem:[%s224 + $0x50] sm:$0xff]
        %v342 = vld [vmem:[%s224 + $0x58] sm:$0xff]
        %v343 = vld [vmem:[%s224 + $0x60] sm:$0xff]
        %v344 = vld [vmem:[%s224 + $0x68] sm:$0xff]
        %v345 = vld [vmem:[%s224 + $0x70] sm:$0xff]
        %v346 = vld [vmem:[%s224 + $0x78] sm:$0xff]
        %347 = vmatpush.msra.mxu0 %v346
        %348 = vmatpush.msra.mxu0 %v345
        %349 = vmatpush.msra.mxu0 %v344
        %350 = vmatpush.msra.mxu0 %v343
        %351 = vmatpush.msra.mxu0 %v342
        %352 = vmatpush.msra.mxu0 %v341
        %353 = vmatpush.msra.mxu0 %v340
        %354 = vmatpush.msra.mxu0 %v339
        %355 = vmatpush.msra.mxu0 %v338
        %356 = vmatpush.msra.mxu0 %v337
        %357 = vmatpush.msra.mxu0 %v336
        %358 = vmatpush.msra.mxu0 %v335
        %359 = vmatpush.msra.mxu0 %v334
        %360 = vmatpush.msra.mxu0 %v333
        %361 = vmatpush.msra.mxu0 %v332
        %362 = vmatpush.msra.mxu0 %v331
        %363 = vmatmul.f32.gmra.mxu0 %v329
        %v364 = vpop.f32.mrf.mxu0
        %v365 = vadd.f32 0.0, %v364
        %366 = vmatmul.f32.gmra.mxu0 %v330
        %v367 = vpop.f32.mrf.mxu0
        %v368 = vadd.f32 0.0, %v367
        %369 = vdwg.mxu0
        %370 = vst.msk [vmem:[%s208] sm:$0xff] %vm236, %v365
        %371 = vst.msk [vmem:[%s208 + $0x8] sm:$0xff] %vm236, %v368
        %s372 = sand.u32 %s117, 1
        %s373 = scalar_lea.sflag [#allocation3], %s372
        %s374 = sand.u32 %s117, 1
        %s375 = smul.addr %s374, 16
        %s376 = scalar_lea.vmem [#allocation2], %s375
        // Predicated region
        $region33: #{tpu_custom_call.1} parent=31 // pred_check
          %p377 = pneg %p127
        $region34: #{tpu_custom_call.1} parent=31 // pred_check_branch
          %379 = sbr.rel (%p377) target = $region36
        $region35: #{tpu_custom_call.1} parent=31 // pred_region
          %s380 = smul.u32 2, %s22
          %382 = vsyncadd %s373, 0
          %s383 = smul.addr %s21, 2
          %s384 = sadd.s32 %s380, %s383
          %s385 = smul.addr %s384, 8
          %s386 = scalar_lea.hbm %s3, %s385
          %s387 = sshll.u32 %s376, 4
          %s388 = int_to_ptr.vmem [resolvable:$true] %s387
          %s389 = sshll.u32 %s386, 4
          %s390 = int_to_ptr.hbm [resolvable:$true] %s389
          %395 = dma.vmem_to_hbm [thread:$0]  %s388, 256, %s390, %s373, 128, 128, 8
        $region36: #{tpu_custom_call.1} parent=31 // pred_fallthru
          _
      $region32: #{tpu_custom_call.1} parent=5 // pred_fallthru
        _
      %p396 = scmp.le.s32.totalorder 2, %s12
      // Predicated region
      $region37: #{tpu_custom_call.1} parent=5 // pred_check
        %p397 = pneg %p396
      $region38: #{tpu_custom_call.1} parent=5 // pred_check_branch
        %399 = sbr.rel (%p397) target = $region40
      $region39: #{tpu_custom_call.1} parent=5 // pred_region
        %s400 = ssub.s32 %s12, 2
        // Predicated region
        $region41: #{tpu_custom_call.1} parent=39 // pred_check
          %p401 = pneg %p133
        $region42: #{tpu_custom_call.1} parent=39 // pred_check_branch
          %403 = sbr.rel (%p401) target = $region44
        $region43: #{tpu_custom_call.1} parent=39 // pred_region
          %s404 = sand.u32 %s118, 1
          %s405 = scalar_lea.sflag [#allocation3], %s404
          %s406 = sand.u32 %s118, 1
          %s407 = smul.addr %s406, 16
          %s408 = scalar_lea.vmem [#allocation2], %s407
          %410 = dma.done %s405, 256
        $region44: #{tpu_custom_call.1} parent=39 // pred_fallthru
          _
      $region40: #{tpu_custom_call.1} parent=5 // pred_fallthru
        _
    $region6: #{tpu_custom_call.1} parent=1 // loop_footer
      %s16 = sadd.s32 1, %s12
    $region7: #{tpu_custom_call.1} parent=1 // loop_footer_branch
      %11 = sbr.rel target = $region3
    $region8: #{tpu_custom_call.1} parent=1 // loop_exit
      _
    %411 = vsyncpa [#allocation3], 1
    %s412 = scalar_lea.sflag [#allocation3], 1
    %413 = vsyncpa %s412, 1

</llo_original>
